<compile_context>
chip_gen: v7x
topology: tpu7x:2x2x1
jax: 0.10.0
libtpu: 0.0.40
codegen_flags: <defaults>
</compile_context>

<pallas_src>
import functools

import jax
import jax.numpy as jnp
import numpy as np
from jax.experimental import pallas as pl
from jax.experimental.pallas import tpu as pltpu


# ---------------------------------------------------------------------------
# Kernel 1: fused two-pass init statistics.
# grid = (gd, 2, gb) = (feature blocks, pass, batch blocks), batch innermost.
# Outputs are (1, D); each (1, td) block stays resident across (pass, batch).
# ---------------------------------------------------------------------------
def _init_stats_kernel(x_ref, w_ref, b_ref, s_ref, acc_sc, mean_sc,
                       *, n_total, tb):
    p = pl.program_id(1)           # pass: 0 = mean, 1 = variance
    b = pl.program_id(2)           # batch block
    nb = pl.num_programs(2)

    @pl.when(b == 0)
    def _():                       # reset accumulator at the start of each pass
        acc_sc[...] = jnp.zeros_like(acc_sc)

    x = x_ref[...].astype(jnp.float32)                           # (tb, td)
    row = jax.lax.broadcasted_iota(jnp.int32, x.shape, 0) + b * tb
    valid = row < n_total                                        # mask tail rows

    def _accumulate(v):
        if tb % 8 == 0:            # vreg-shaped lockstep VPU adds (no XLU)
            acc_sc[...] += v.reshape(tb // 8, 8, v.shape[-1]).sum(axis=0)
        else:                      # tiny full-batch tile (tb == B < 8-aligned)
            acc_sc[0:1, :] += jnp.sum(v, axis=0, keepdims=True)

    @pl.when(p == 0)
    def _():
        _accumulate(jnp.where(valid, x, 0.0))

    @pl.when(jnp.logical_and(p == 0, b == nb - 1))
    def _():
        mean_sc[...] = (jnp.sum(acc_sc[...], axis=0, keepdims=True)
                        / jnp.float32(n_total))

    @pl.when(p == 1)
    def _():
        d = jnp.where(valid, x - mean_sc[...], 0.0)
        _accumulate(d * d)

    @pl.when(jnp.logical_and(p == 1, b == nb - 1))
    def _():
        # torch.std is unbiased (ddof=1); requires n_total >= 2 (else inf/NaN,
        # matching torch's degenerate behavior).
        var = (jnp.sum(acc_sc[...], axis=0, keepdims=True)
               / jnp.float32(n_total - 1))
        std = jnp.sqrt(jnp.maximum(var, 0.0))
        scale = 1.0 / (std + 1.0)
        w_ref[...] = jnp.log(scale)      # stored parameter: log(1/(std+1))
        b_ref[...] = mean_sc[...]        # bias = mean
        s_ref[...] = scale               # hoisted exp(weight)


# ---------------------------------------------------------------------------
# Kernel 2: elementwise affine transform over (packed) batch rows.
# bias/scale are (1, L) float32 and stay resident; x tiles are streamed.
# ---------------------------------------------------------------------------
def _apply_kernel(x_ref, b_ref, s_ref, out_ref):
    x = x_ref[...].astype(jnp.float32)            # f32 math, params stay f32
    out_ref[...] = ((x - b_ref[...]) * s_ref[...]).astype(out_ref.dtype)


# ---------------------------------------------------------------------------
# Tiling helpers
# ---------------------------------------------------------------------------
def _pick_init_tiles(B, D, itemsize):
    """Byte-aware init tiles: ~4 MiB input block, tb multiple of 8 (or full B),
    td a multiple of 128 (or full D)."""
    td = min(D, 1024) if D % 128 == 0 else D
    target = 4 << 20
    tb = max(8, (target // max(1, td * itemsize)) // 8 * 8)
    tb = min(tb, B)                    # tb == B (full dim) is always legal
    return tb, td


def _lane_pack(B, D):
    """View (B, D) as (R, L) with L a multiple of 128 (lane-dense stores) by
    packing `rep` consecutive rows per lane row.  Returns (rep, R, L, Bpad);
    the caller pads B up to Bpad so the sub-128-lane fallback never triggers."""
    if D % 128 == 0:
        return 1, B, D, B
    rep = int(np.lcm(D, 128)) // D
    bpad = ((B + rep - 1) // rep) * rep
    return rep, bpad // rep, rep * D, bpad


def _pick_apply_tb(R, L, itemsize):
    """Row tile for the apply kernel: ~8 MiB input block (v7x HBM roofline),
    multiple of 8, never exceeding R."""
    target = 8 << 20
    tb = max(8, (target // max(1, L * itemsize)) // 8 * 8)
    return min(tb, R)


# ---------------------------------------------------------------------------
# Wrappers
# ---------------------------------------------------------------------------
def actnorm_init_stats(x):
    """Compute (weight, bias, scale) as (1, D) float32 arrays from x (B, D)."""
    B, D = x.shape
    itemsize = jnp.dtype(x.dtype).itemsize
    tb, td = _pick_init_tiles(B, D, itemsize)
    gd, gb = pl.cdiv(D, td), pl.cdiv(B, tb)
    kernel = functools.partial(_init_stats_kernel, n_total=B, tb=tb)

    in_block = tb * td * itemsize
    vmem_limit = int(min(max(2 * in_block + 16 * td * 4 + (4 << 20),
                             16 << 20), 32 << 20))

    return pl.pallas_call(
        kernel,
        out_shape=(
            jax.ShapeDtypeStruct((1, D), jnp.float32),   # weight = log(scale)
            jax.ShapeDtypeStruct((1, D), jnp.float32),   # bias   = mean
            jax.ShapeDtypeStruct((1, D), jnp.float32),   # scale  = exp(weight)
        ),
        grid=(gd, 2, gb),
        in_specs=[pl.BlockSpec((tb, td), lambda d, p, b: (b, d))],
        out_specs=(
            pl.BlockSpec((1, td), lambda d, p, b: (0, d)),
            pl.BlockSpec((1, td), lambda d, p, b: (0, d)),
            pl.BlockSpec((1, td), lambda d, p, b: (0, d)),
        ),
        scratch_shapes=[
            pltpu.VMEM((8, td), jnp.float32),   # vreg-shaped partial sums
            pltpu.VMEM((1, td), jnp.float32),   # mean carried pass 0 -> pass 1
        ],
        compiler_params=pltpu.CompilerParams(
            dimension_semantics=("parallel", "arbitrary", "arbitrary"),
            vmem_limit_bytes=vmem_limit),
    )(x)


def actnorm_apply(x, bias, scale):
    """(x - bias) * scale, tiled & pipelined over batch, lane-dense output."""
    B, D = x.shape
    itemsize = jnp.dtype(x.dtype).itemsize
    rep, R, L, bpad = _lane_pack(B, D)

    x_in = x if bpad == B else jnp.pad(x, ((0, bpad - B), (0, 0)))
    xp = x_in.reshape(R, L)                         # free row-major reshape

    b = bias.reshape(1, D).astype(jnp.float32)      # keep params f32 in-kernel
    s = scale.reshape(1, D).astype(jnp.float32)
    if rep > 1:
        b = jnp.tile(b, (1, rep))
        s = jnp.tile(s, (1, rep))

    tb = _pick_apply_tb(R, L, itemsize)
    grid = (pl.cdiv(R, tb),)

    blk = tb * L * itemsize
    vmem_limit = int(min(max(4 * blk + 8 * L * 4 + (4 << 20),
                             16 << 20), 48 << 20))

    out = pl.pallas_call(
        _apply_kernel,
        out_shape=jax.ShapeDtypeStruct((R, L), x.dtype),
        grid=grid,
        in_specs=[
            pl.BlockSpec((tb, L), lambda i: (i, 0)),   # streamed batch tiles
            pl.BlockSpec((1, L), lambda i: (0, 0)),    # bias, resident
            pl.BlockSpec((1, L), lambda i: (0, 0)),    # scale, resident
        ],
        out_specs=pl.BlockSpec((tb, L), lambda i: (i, 0)),
        compiler_params=pltpu.CompilerParams(
            dimension_semantics=("parallel",),
            vmem_limit_bytes=vmem_limit),
    )(xp, b, s)

    out = out.reshape(bpad, D)
    return out if bpad == B else out[:B]


class ActNorm:
    """JAX/Pallas port of the PyTorch ActNorm module (forward only)."""

    def __init__(self, num_inputs):
        self.num_inputs = num_inputs
        self.weight = jnp.ones((num_inputs,), dtype=jnp.float32)
        self.bias = jnp.zeros((num_inputs,), dtype=jnp.float32)
        self._scale = jnp.ones((num_inputs,), dtype=jnp.float32)  # exp(weight)
        # TODO(synk): Python-side `initialized` flag is host state; under
        # jit/scan re-tracing the init path can silently re-run or be skipped,
        # same footgun as the original torch code.  Requires batch >= 2.
        self.initialized = False

    def __call__(self, inputs):
        if not self.initialized:
            w, b, s = actnorm_init_stats(inputs)
            self.weight = w.reshape(-1)
            self.bias = b.reshape(-1)
            self._scale = s.reshape(-1)
            self.initialized = True
        return actnorm_apply(inputs, self.bias, self._scale)


def _reference(x):
    """Pure-numpy reference of the torch forward (first, data-dependent call)."""
    x = np.asarray(x, dtype=np.float32)
    std = x.std(axis=0, ddof=1)                 # torch unbiased std
    mean = x.mean(axis=0)
    weight = np.log(1.0 / (std + 1.0))
    bias = mean
    out = (x - bias) * np.exp(weight)
    return out, weight, bias


if __name__ == "__main__":
    B, D = 8, 32                                # batch=8, num_inputs=32
    key = jax.random.PRNGKey(0)
    x = jax.random.normal(key, (B, D), dtype=jnp.float32) * 2.0 + 0.5

    layer = ActNorm(D)

    # First call: fused two-pass init-stats kernel, then the apply kernel.
    out1 = jax.block_until_ready(layer(x))
    # Second call: applies the stored bias/scale (apply kernel only).
    out2 = jax.block_until_ready(layer(x))

    ref_out, ref_w, ref_b = _reference(np.asarray(x))
    np.testing.assert_allclose(np.asarray(out1), ref_out, rtol=1e-5, atol=1e-5)
    np.testing.assert_allclose(np.asarray(out2), ref_out, rtol=1e-5, atol=1e-5)
    np.testing.assert_allclose(np.asarray(layer.weight), ref_w, rtol=1e-5, atol=1e-5)
    np.testing.assert_allclose(np.asarray(layer.bias), ref_b, rtol=1e-5, atol=1e-5)

    print("KERNEL_OK")
</pallas_src>

<mosaic_0001>
module attributes {stable_mosaic.version = 11 : i64} {
  func.func @_init_stats_kernel(%arg0: i32, %arg1: i32, %arg2: i32, %arg3: memref<8x32xf32, #tpu.memory_space<vmem>>, %arg4: memref<1x32xf32, #tpu.memory_space<vmem>>, %arg5: memref<1x32xf32, #tpu.memory_space<vmem>>, %arg6: memref<1x32xf32, #tpu.memory_space<vmem>>, %arg7: memref<8x32xf32, #tpu.memory_space<vmem>>, %arg8: memref<1x32xf32, #tpu.memory_space<vmem>>) attributes {dimension_semantics = [#tpu.dimension_semantics<parallel>, #tpu.dimension_semantics<arbitrary>, #tpu.dimension_semantics<arbitrary>], iteration_bounds = array<i64: 1, 2, 1>, scalar_prefetch = 0 : i64, scratch_operands = 2 : i64, tpu.core_type = #tpu.core_type<tc>, window_params = [{transform_indices = @transform_0, window_bounds = array<i64: 8, 32>}, {transform_indices = @transform_1, window_bounds = array<i64: 1, 32>}, {transform_indices = @transform_2, window_bounds = array<i64: 1, 32>}, {transform_indices = @transform_3, window_bounds = array<i64: 1, 32>}]} {
    %c0_i32 = arith.constant 0 : i32
    %0 = arith.cmpi eq, %arg2, %c0_i32 : i32
    %1 = arith.extui %0 : i1 to i32
    %c0_i32_0 = arith.constant 0 : i32
    %2 = arith.cmpi ne, %1, %c0_i32_0 : i32
    scf.if %2 {
      %cst = arith.constant 0.000000e+00 : f32
      %26 = vector.broadcast %cst : f32 to vector<8x32xf32>
      %c0_12 = arith.constant 0 : index
      %c0_13 = arith.constant 0 : index
      %27 = vector.load %arg7[%c0_12, %c0_13] : memref<8x32xf32, #tpu.memory_space<vmem>>, vector<8x32xf32>
      tpu.vector_store %arg7[%c0_12, %c0_13], %26 {strides = array<i32>} : memref<8x32xf32, #tpu.memory_space<vmem>>, vector<8x32xf32>,
    } else {
    }
    %c0 = arith.constant 0 : index
    %c0_1 = arith.constant 0 : index
    %3 = vector.load %arg3[%c0, %c0_1] : memref<8x32xf32, #tpu.memory_space<vmem>>, vector<8x32xf32>
    %4 = tpu.iota {dimensions = array<i32: 0>} : vector<8x32xi32>
    %c8_i32 = arith.constant 8 : i32
    %5 = arith.muli %arg2, %c8_i32 : i32
    %6 = vector.broadcast %5 : i32 to vector<8x32xi32>
    %7 = arith.addi %4, %6 : vector<8x32xi32>
    %c8_i32_2 = arith.constant 8 : i32
    %8 = vector.broadcast %c8_i32_2 : i32 to vector<8x32xi32>
    %9 = arith.cmpi slt, %7, %8 : vector<8x32xi32>
    %c0_i32_3 = arith.constant 0 : i32
    %10 = arith.cmpi eq, %arg1, %c0_i32_3 : i32
    %11 = arith.extui %10 : i1 to i32
    %c0_i32_4 = arith.constant 0 : i32
    %12 = arith.cmpi ne, %11, %c0_i32_4 : i32
    scf.if %12 {
      %cst = arith.constant 0.000000e+00 : f32
      %26 = vector.broadcast %cst : f32 to vector<8x32xf32>
      %27 = arith.select %9, %3, %26 : vector<8x32xi1>, vector<8x32xf32>
      %c0_12 = arith.constant 0 : index
      %c0_13 = arith.constant 0 : index
      %28 = vector.load %arg7[%c0_12, %c0_13] : memref<8x32xf32, #tpu.memory_space<vmem>>, vector<8x32xf32>
      %29 = vector.shape_cast %27 : vector<8x32xf32> to vector<1x8x32xf32>
      %cst_14 = arith.constant dense<0.000000e+00> : vector<8x32xf32>
      %30 = vector.multi_reduction <add>, %29, %cst_14 [0] : vector<1x8x32xf32> to vector<8x32xf32>
      %31 = arith.addf %28, %30 : vector<8x32xf32>
      %c0_15 = arith.constant 0 : index
      %c0_16 = arith.constant 0 : index
      %32 = vector.load %arg7[%c0_15, %c0_16] : memref<8x32xf32, #tpu.memory_space<vmem>>, vector<8x32xf32>
      tpu.vector_store %arg7[%c0_15, %c0_16], %31 {strides = array<i32>} : memref<8x32xf32, #tpu.memory_space<vmem>>, vector<8x32xf32>,
    } else {
    }
    %c0_i32_5 = arith.constant 0 : i32
    %13 = arith.cmpi eq, %arg1, %c0_i32_5 : i32
    %c0_i32_6 = arith.constant 0 : i32
    %14 = arith.cmpi eq, %arg2, %c0_i32_6 : i32
    %15 = arith.andi %13, %14 : i1
    %16 = arith.extui %15 : i1 to i32
    %c0_i32_7 = arith.constant 0 : i32
    %17 = arith.cmpi ne, %16, %c0_i32_7 : i32
    scf.if %17 {
      %c0_12 = arith.constant 0 : index
      %c0_13 = arith.constant 0 : index
      %26 = vector.load %arg7[%c0_12, %c0_13] : memref<8x32xf32, #tpu.memory_space<vmem>>, vector<8x32xf32>
      %cst = arith.constant dense<0.000000e+00> : vector<32xf32>
      %27 = vector.multi_reduction <add>, %26, %cst [0] : vector<8x32xf32> to vector<32xf32>
      %28 = vector.shape_cast %27 : vector<32xf32> to vector<1x32xf32>
      %cst_14 = arith.constant 8.000000e+00 : f32
      %29 = vector.broadcast %cst_14 : f32 to vector<1x32xf32>
      %30 = arith.divf %28, %29 : vector<1x32xf32>
      %c0_15 = arith.constant 0 : index
      %c0_16 = arith.constant 0 : index
      %31 = vector.load %arg8[%c0_15, %c0_16] : memref<1x32xf32, #tpu.memory_space<vmem>>, vector<1x32xf32>
      tpu.vector_store %arg8[%c0_15, %c0_16], %30 {strides = array<i32>} : memref<1x32xf32, #tpu.memory_space<vmem>>, vector<1x32xf32>,
    } else {
    }
    %c1_i32 = arith.constant 1 : i32
    %18 = arith.cmpi eq, %arg1, %c1_i32 : i32
    %19 = arith.extui %18 : i1 to i32
    %c0_i32_8 = arith.constant 0 : i32
    %20 = arith.cmpi ne, %19, %c0_i32_8 : i32
    scf.if %20 {
      %c0_12 = arith.constant 0 : index
      %c0_13 = arith.constant 0 : index
      %26 = vector.load %arg8[%c0_12, %c0_13] : memref<1x32xf32, #tpu.memory_space<vmem>>, vector<1x32xf32>
      %27 = vector.broadcast %26 : vector<1x32xf32> to vector<8x32xf32>
      %28 = arith.subf %3, %27 : vector<8x32xf32>
      %cst = arith.constant 0.000000e+00 : f32
      %29 = vector.broadcast %cst : f32 to vector<8x32xf32>
      %30 = arith.select %9, %28, %29 : vector<8x32xi1>, vector<8x32xf32>
      %31 = arith.mulf %30, %30 : vector<8x32xf32>
      %c0_14 = arith.constant 0 : index
      %c0_15 = arith.constant 0 : index
      %32 = vector.load %arg7[%c0_14, %c0_15] : memref<8x32xf32, #tpu.memory_space<vmem>>, vector<8x32xf32>
      %33 = vector.shape_cast %31 : vector<8x32xf32> to vector<1x8x32xf32>
      %cst_16 = arith.constant dense<0.000000e+00> : vector<8x32xf32>
      %34 = vector.multi_reduction <add>, %33, %cst_16 [0] : vector<1x8x32xf32> to vector<8x32xf32>
      %35 = arith.addf %32, %34 : vector<8x32xf32>
      %c0_17 = arith.constant 0 : index
      %c0_18 = arith.constant 0 : index
      %36 = vector.load %arg7[%c0_17, %c0_18] : memref<8x32xf32, #tpu.memory_space<vmem>>, vector<8x32xf32>
      tpu.vector_store %arg7[%c0_17, %c0_18], %35 {strides = array<i32>} : memref<8x32xf32, #tpu.memory_space<vmem>>, vector<8x32xf32>,
    } else {
    }
    %c1_i32_9 = arith.constant 1 : i32
    %21 = arith.cmpi eq, %arg1, %c1_i32_9 : i32
    %c0_i32_10 = arith.constant 0 : i32
    %22 = arith.cmpi eq, %arg2, %c0_i32_10 : i32
    %23 = arith.andi %21, %22 : i1
    %24 = arith.extui %23 : i1 to i32
    %c0_i32_11 = arith.constant 0 : i32
    %25 = arith.cmpi ne, %24, %c0_i32_11 : i32
    scf.if %25 {
      %c0_12 = arith.constant 0 : index
      %c0_13 = arith.constant 0 : index
      %26 = vector.load %arg7[%c0_12, %c0_13] : memref<8x32xf32, #tpu.memory_space<vmem>>, vector<8x32xf32>
      %cst = arith.constant dense<0.000000e+00> : vector<32xf32>
      %27 = vector.multi_reduction <add>, %26, %cst [0] : vector<8x32xf32> to vector<32xf32>
      %28 = vector.shape_cast %27 : vector<32xf32> to vector<1x32xf32>
      %cst_14 = arith.constant 7.000000e+00 : f32
      %29 = vector.broadcast %cst_14 : f32 to vector<1x32xf32>
      %30 = arith.divf %28, %29 : vector<1x32xf32>
      %cst_15 = arith.constant 0.000000e+00 : f32
      %31 = vector.broadcast %cst_15 : f32 to vector<1x32xf32>
      %32 = arith.maximumf %30, %31 : vector<1x32xf32>
      %33 = math.sqrt %32 : vector<1x32xf32>
      %cst_16 = arith.constant 1.000000e+00 : f32
      %34 = vector.broadcast %cst_16 : f32 to vector<1x32xf32>
      %35 = arith.addf %33, %34 : vector<1x32xf32>
      %cst_17 = arith.constant 1.000000e+00 : f32
      %36 = vector.broadcast %cst_17 : f32 to vector<1x32xf32>
      %37 = arith.divf %36, %35 : vector<1x32xf32>
      %38 = math.log %37 : vector<1x32xf32>
      %c0_18 = arith.constant 0 : index
      %c0_19 = arith.constant 0 : index
      %39 = vector.load %arg4[%c0_18, %c0_19] : memref<1x32xf32, #tpu.memory_space<vmem>>, vector<1x32xf32>
      tpu.vector_store %arg4[%c0_18, %c0_19], %38 {strides = array<i32>} : memref<1x32xf32, #tpu.memory_space<vmem>>, vector<1x32xf32>,
      %c0_20 = arith.constant 0 : index
      %c0_21 = arith.constant 0 : index
      %40 = vector.load %arg8[%c0_20, %c0_21] : memref<1x32xf32, #tpu.memory_space<vmem>>, vector<1x32xf32>
      %c0_22 = arith.constant 0 : index
      %c0_23 = arith.constant 0 : index
      %41 = vector.load %arg5[%c0_22, %c0_23] : memref<1x32xf32, #tpu.memory_space<vmem>>, vector<1x32xf32>
      tpu.vector_store %arg5[%c0_22, %c0_23], %40 {strides = array<i32>} : memref<1x32xf32, #tpu.memory_space<vmem>>, vector<1x32xf32>,
      %c0_24 = arith.constant 0 : index
      %c0_25 = arith.constant 0 : index
      %42 = vector.load %arg6[%c0_24, %c0_25] : memref<1x32xf32, #tpu.memory_space<vmem>>, vector<1x32xf32>
      tpu.vector_store %arg6[%c0_24, %c0_25], %37 {strides = array<i32>} : memref<1x32xf32, #tpu.memory_space<vmem>>, vector<1x32xf32>,
    } else {
    }
    return
  }
  func.func @transform_0(%arg0: i32, %arg1: i32, %arg2: i32) -> (i32, i32) {
    %c0_i32 = arith.constant 0 : i32
    return %arg2, %arg0 : i32, i32
  }
  func.func @transform_1(%arg0: i32, %arg1: i32, %arg2: i32) -> (i32, i32) {
    %c0_i32 = arith.constant 0 : i32
    %c0_i32_0 = arith.constant 0 : i32
    return %c0_i32, %arg0 : i32, i32
  }
  func.func @transform_2(%arg0: i32, %arg1: i32, %arg2: i32) -> (i32, i32) {
    %c0_i32 = arith.constant 0 : i32
    %c0_i32_0 = arith.constant 0 : i32
    return %c0_i32, %arg0 : i32, i32
  }
  func.func @transform_3(%arg0: i32, %arg1: i32, %arg2: i32) -> (i32, i32) {
    %c0_i32 = arith.constant 0 : i32
    %c0_i32_0 = arith.constant 0 : i32
    return %c0_i32, %arg0 : i32, i32
  }
}

</mosaic_0001>

<llo_original>
// kernel: tpu_custom_call.1
$region0: #{tpu_custom_call.1}
  #allocation0 [shape = 'u32[]', space=smem, size = 0x4, offset = 0x4, fixed_abs, tag = 'smem constant byte address 0x4 - core index']
  #allocation1 [shape = 'u32[144,128]{1,0:T(1,128)}', space=vmem, size = 0x12000, scoped, tag = 'internal scratch']
  #allocation2 [shape = 'f32[8,32]{1,0:T(8,128)}', space=vmem, size = 0x1000, scoped, tag = 'scratch operand']
  #allocation3 [shape = 'f32[1,32]{1,0:T(1,128)}', space=vmem, size = 0x200, scoped, tag = 'scratch operand']
  %s0 = inlined_call_operand.hbm [shape: f32[8,32], index: 0, kind: input, shape index: {}]
  %s1 = inlined_call_operand.hbm [shape: f32[1,32], index: 1, kind: output, shape index: {0}]
  %s2 = inlined_call_operand.hbm [shape: f32[1,32], index: 2, kind: output, shape index: {1}]
  %s3 = inlined_call_operand.hbm [shape: f32[1,32], index: 3, kind: output, shape index: {2}]
  %4 = xla_tuple %s1, %s2, %s3
  %s5 = sld [smem:[#allocation0]]
  $region77: #{tpu_custom_call.1} parent=0
    _
  %s7 = ssub.s32 1, %s5
  %s8 = scalar_select 0, %s7, %s5
  $region1: #{tpu_custom_call.1} parent=0
    #allocation4 [shape = 'u8[4096]{0}', space=vmem, size = 0x1000, scoped, tag = 'input window, operand 0, single buffered']
    #allocation5 [shape = 's32[2]{0}', space=sflag, size = 0x8, scoped, tag = 'scoped memory for tpu_custom_call.1']
    #allocation6 [shape = 's32[2]{0}', space=sflag, size = 0x8, scoped, tag = 'scoped memory for tpu_custom_call.1']
    #allocation7 [shape = 'u8[512]{0}', space=vmem, size = 0x400, scoped, tag = 'output window, operand 0, single buffered']
    #allocation8 [shape = 'u8[512]{0}', space=vmem, size = 0x400, scoped, tag = 'output window, operand 1, single buffered']
    #allocation9 [shape = 's32[1]{0}', space=sflag, size = 0x4, scoped, tag = 'scoped memory for tpu_custom_call.1']
    #allocation10 [shape = 'u8[512]{0}', space=vmem, size = 0x400, scoped, tag = 'output window, operand 2, single buffered']
    %9 = vsyncpa [#allocation5], 0
    %10 = vsyncpa [#allocation6], 0
    %11 = vsyncpa [#allocation9], 0
    loop: start=0, step=1, limit=4
    $region2: #{tpu_custom_call.1} parent=1 // loop_pre_header
      _
    $region3: #{tpu_custom_call.1} parent=1 // loop_header
      %s13 = sphi 0, %s17
      %p14 = scmp.ge.s32.totalorder %s13, 4
      %s20 = sphi 0, %s39
      %s21 = sphi 0, %s35
      %s22 = sphi 0, %s31
      %s23 = sphi 0, %s20
      %s24 = sphi 0, %s21
      %s25 = sphi 0, %s22
      %s26 = sphi 0, %s23
      %s27 = sphi 0, %s24
      %s28 = sphi 0, %s25
      %s44 = sphi 0, %s46
      %s47 = sphi 0, %s44
      %s48 = sphi 0, %s47
      %s64 = sphi 0, %s48
      %s70 = sphi 0, %s72
      %s73 = sphi 0, %s70
      %s74 = sphi 0, %s73
      %s90 = sphi 0, %s74
      %s96 = sphi 0, %s98
      %s99 = sphi 0, %s96
      %s100 = sphi 0, %s99
      %s116 = sphi 0, %s100
      %s122 = sphi 0, %s124
      %s125 = sphi 0, %s122
      %s126 = sphi 0, %s125
      %s142 = sphi 0, %s126
    $region4: #{tpu_custom_call.1} parent=1 // loop_header_branch
      %16 = sbr.rel (%p14) target = $region8
    $region5: #{tpu_custom_call.1} parent=1 // loop_body
      %s18 = ssub.s32 %s13, 1
      %s19 = ssub.s32 %s13, 2
      %s29 = sadd.s32 1, %s22
      %p30 = scmp.ge.s32.totalorder %s29, 1
      %s31 = scalar_select %p30, 0, %s29
      %s32 = sadd.s32 1, %s21
      %s33 = scalar_select %p30, %s32, %s21
      %p34 = scmp.ge.s32.totalorder %s33, 2
      %s35 = scalar_select %p34, 0, %s33
      %s36 = sadd.s32 1, %s20
      %s37 = scalar_select %p34, %s36, %s20
      %p38 = scmp.ge.s32.totalorder %s37, 1
      %s39 = scalar_select %p38, 0, %s37
      %s40 = ssub.s32 %s22, %s31
      %s41 = ssub.s32 %s20, %s39
      %s42 = sor.u32 %s40, %s41
      %p43 = scmp.eq.s32.totalorder %s42, 0
      %s45 = sadd.s32 %s44, 1
      %s46 = scalar_select %p43, %s44, %s45
      %p49 = pneg %p43
      %p50 = scmp.eq.s32.totalorder %s13, 1
      %p51 = por %p49, %p50
      %p52 = scmp.ne.s32.totalorder %s44, %s47
      %p53 = scmp.eq.s32.totalorder %s13, 0
      %p54 = por %p52, %p53
      %p55 = scmp.ne.s32.totalorder %s44, %s47
      %p56 = scmp.eq.s32.totalorder %s18, 1
      %p57 = por %p55, %p56
      %p58 = scmp.ne.s32.totalorder %s47, %s48
      %p59 = scmp.eq.s32.totalorder %s18, 0
      %p60 = por %p58, %p59
      %p61 = scmp.ne.s32.totalorder %s47, %s48
      %p62 = scmp.eq.s32.totalorder %s19, 1
      %p63 = por %p61, %p62
      %p65 = scmp.ne.s32.totalorder %s48, %s64
      %p66 = scmp.eq.s32.totalorder %s19, 0
      %p67 = por %p65, %p66
      %s68 = ssub.s32 %s20, %s39
      %p69 = scmp.eq.s32.totalorder %s68, 0
      %s71 = sadd.s32 %s70, 1
      %s72 = scalar_select %p69, %s70, %s71
      %p75 = pneg %p69
      %p76 = scmp.eq.s32.totalorder %s13, 1
      %p77 = por %p75, %p76
      %p78 = scmp.ne.s32.totalorder %s70, %s73
      %p79 = scmp.eq.s32.totalorder %s13, 0
      %p80 = por %p78, %p79
      %p81 = scmp.ne.s32.totalorder %s70, %s73
      %p82 = scmp.eq.s32.totalorder %s18, 1
      %p83 = por %p81, %p82
      %p84 = scmp.ne.s32.totalorder %s73, %s74
      %p85 = scmp.eq.s32.totalorder %s18, 0
      %p86 = por %p84, %p85
      %p87 = scmp.ne.s32.totalorder %s73, %s74
      %p88 = scmp.eq.s32.totalorder %s19, 1
      %p89 = por %p87, %p88
      %p91 = scmp.ne.s32.totalorder %s74, %s90
      %p92 = scmp.eq.s32.totalorder %s19, 0
      %p93 = por %p91, %p92
      %s94 = ssub.s32 %s20, %s39
      %p95 = scmp.eq.s32.totalorder %s94, 0
      %s97 = sadd.s32 %s96, 1
      %s98 = scalar_select %p95, %s96, %s97
      %p101 = pneg %p95
      %p102 = scmp.eq.s32.totalorder %s13, 1
      %p103 = por %p101, %p102
      %p104 = scmp.ne.s32.totalorder %s96, %s99
      %p105 = scmp.eq.s32.totalorder %s13, 0
      %p106 = por %p104, %p105
      %p107 = scmp.ne.s32.totalorder %s96, %s99
      %p108 = scmp.eq.s32.totalorder %s18, 1
      %p109 = por %p107, %p108
      %p110 = scmp.ne.s32.totalorder %s99, %s100
      %p111 = scmp.eq.s32.totalorder %s18, 0
      %p112 = por %p110, %p111
      %p113 = scmp.ne.s32.totalorder %s99, %s100
      %p114 = scmp.eq.s32.totalorder %s19, 1
      %p115 = por %p113, %p114
      %p117 = scmp.ne.s32.totalorder %s100, %s116
      %p118 = scmp.eq.s32.totalorder %s19, 0
      %p119 = por %p117, %p118
      %s120 = ssub.s32 %s20, %s39
      %p121 = scmp.eq.s32.totalorder %s120, 0
      %s123 = sadd.s32 %s122, 1
      %s124 = scalar_select %p121, %s122, %s123
      %p127 = pneg %p121
      %p128 = scmp.eq.s32.totalorder %s13, 1
      %p129 = por %p127, %p128
      %p130 = scmp.ne.s32.totalorder %s122, %s125
      %p131 = scmp.eq.s32.totalorder %s13, 0
      %p132 = por %p130, %p131
      %p133 = scmp.ne.s32.totalorder %s122, %s125
      %p134 = scmp.eq.s32.totalorder %s18, 1
      %p135 = por %p133, %p134
      %p136 = scmp.ne.s32.totalorder %s125, %s126
      %p137 = scmp.eq.s32.totalorder %s18, 0
      %p138 = por %p136, %p137
      %p139 = scmp.ne.s32.totalorder %s125, %s126
      %p140 = scmp.eq.s32.totalorder %s19, 1
      %p141 = por %p139, %p140
      %p143 = scmp.ne.s32.totalorder %s126, %s142
      %p144 = scmp.eq.s32.totalorder %s19, 0
      %p145 = por %p143, %p144
      %p146 = scmp.le.s32.totalorder 1, %s13
      %p147 = scmp.lt.s32.totalorder %s13, 3
      %p148 = pnand %p146, %p147
      %p149 = pneg %p148
      // Predicated region
      $region9: #{tpu_custom_call.1} parent=5 // pred_check
        _
      $region10: #{tpu_custom_call.1} parent=5 // pred_check_branch
        %151 = sbr.rel (%p148) target = $region12
      $region11: #{tpu_custom_call.1} parent=5 // pred_region
        %s152 = ssub.s32 %s13, 1
        // Predicated region
        $region13: #{tpu_custom_call.1} parent=11 // pred_check
          %p153 = pneg %p60
        $region14: #{tpu_custom_call.1} parent=11 // pred_check_branch
          %155 = sbr.rel (%p153) target = $region16
        $region15: #{tpu_custom_call.1} parent=11 // pred_region
          %s157 = ssub.s32 128, 128
          %158 = vsyncadd [#allocation5], %s157
          %s159 = sadd.s32 %s23, %s25
          %s160 = smul.addr %s159, 128
          %s161 = scalar_lea.hbm %s0, %s160
          %s163 = sshll.u32 [#allocation4], 4
          %s164 = int_to_ptr.vmem [resolvable:$true] %s163
          %166 = dma.hbm_to_vmem [thread:$0]  %s161, 128, %s164, [#allocation5]
        $region16: #{tpu_custom_call.1} parent=11 // pred_fallthru
          _
      $region12: #{tpu_custom_call.1} parent=5 // pred_fallthru
        _
      %p167 = scmp.lt.s32.totalorder %s13, 2
      // Predicated region
      $region17: #{tpu_custom_call.1} parent=5 // pred_check
        %p168 = pneg %p167
      $region18: #{tpu_custom_call.1} parent=5 // pred_check_branch
        %170 = sbr.rel (%p168) target = $region20
      $region19: #{tpu_custom_call.1} parent=5 // pred_region
        _
      $region20: #{tpu_custom_call.1} parent=5 // pred_fallthru
        _
      %p171 = scmp.le.s32.totalorder 1, %s13
      %p172 = scmp.lt.s32.totalorder %s13, 3
      %p173 = pnand %p171, %p172
      %p174 = pneg %p173
      // Predicated region
      $region21: #{tpu_custom_call.1} parent=5 // pred_check
        _
      $region22: #{tpu_custom_call.1} parent=5 // pred_check_branch
        %176 = sbr.rel (%p173) target = $region24
      $region23: #{tpu_custom_call.1} parent=5 // pred_region
        %s177 = ssub.s32 %s13, 1
        // Predicated region
        $region25: #{tpu_custom_call.1} parent=23 // pred_check
          %p178 = pneg %p60
        $region26: #{tpu_custom_call.1} parent=23 // pred_check_branch
          %180 = sbr.rel (%p178) target = $region28
        $region27: #{tpu_custom_call.1} parent=23 // pred_region
          %181 = dma.done [#allocation5], 128
        $region28: #{tpu_custom_call.1} parent=23 // pred_fallthru
          _
        %p182 = pneg %p60
        %p183 = pneg %p57
        %p184 = pneg %p86
        %p185 = pneg %p83
        %p186 = pneg %p112
        %p187 = pneg %p109
        %p188 = pneg %p138
        %p189 = pneg %p135
        %p190 = scmp.eq.s32.totalorder %s25, 0
        // Predicated region
        $region29: #{tpu_custom_call.1} parent=23 // pred_check
          %p191 = pneg %p190
        $region30: #{tpu_custom_call.1} parent=23 // pred_check_branch
          %193 = sbr.rel (%p191) target = $region32
        $region31: #{tpu_custom_call.1} parent=23 // pred_region
          %vm194 = vcmask 261120
          %195 = vst.msk [vmem:[#allocation2] sm:$0xff] %vm194, 0.0
        $region32: #{tpu_custom_call.1} parent=23 // pred_fallthru
          _
        %v196 = vld [vmem:[#allocation4] sm:$0xff]
        %v197 = vlaneseq
        %v198 = vshrl.u32 %v197, 7
        %s199 = smul.u32 %s25, 8
        %v200 = vstv %s199
        %v201 = vadd.s32 %v198, %v200
        %vm202 = vcmp.lt.s32.totalorder %v201, 8
        %p203 = scmp.eq.s32.totalorder %s24, 0
        // Predicated region
        $region33: #{tpu_custom_call.1} parent=23 // pred_check
          %p204 = pneg %p203
        $region34: #{tpu_custom_call.1} parent=23 // pred_check_branch
          %206 = sbr.rel (%p204) target = $region36
        $region35: #{tpu_custom_call.1} parent=23 // pred_region
          %v207 = vsel %vm202, %v196, 0.0
          %v208 = vld [vmem:[#allocation2] sm:$0xff]
          %v209 = vadd.f32 %v207, 0.0
          %v210 = vadd.f32 %v208, %v209
          %vm211 = vcmask 261120
          %212 = vst.msk [vmem:[#allocation2] sm:$0xff] %vm211, %v210
        $region36: #{tpu_custom_call.1} parent=23 // pred_fallthru
          _
        %p213 = pnand %p203, %p190
        %p214 = pneg %p213
        // Predicated region
        $region37: #{tpu_custom_call.1} parent=23 // pred_check
          _
        $region38: #{tpu_custom_call.1} parent=23 // pred_check_branch
          %216 = sbr.rel (%p213) target = $region40
        $region39: #{tpu_custom_call.1} parent=23 // pred_region
          %v217 = vld [vmem:[#allocation2] sm:$0xff]
          %vm218 = vcmask 261120
          %v219 = vsel %vm218, %v217, 0.0
          %v220 = vrot.slane %v219, 4
          %v221 = vadd.f32 %v219, %v220
          %v222 = vrot.slane %v221, 2
          %v223 = vadd.f32 %v221, %v222
          %v224 = vrot.slane %v223, 1
          %v225 = vadd.f32 %v223, %v224
          %v226 = vrcp.pop 8.0
          %v227 = vmul.f32 %v225, %v226
          %vm228 = vcmask 253952
          %229 = vst.msk [vmem:[#allocation3] sm:$0x1] %vm228, %v227
        $region40: #{tpu_custom_call.1} parent=23 // pred_fallthru
          _
        %p230 = scmp.eq.s32.totalorder %s24, 1
        // Predicated region
        $region41: #{tpu_custom_call.1} parent=23 // pred_check
          %p231 = pneg %p230
        $region42: #{tpu_custom_call.1} parent=23 // pred_check_branch
          %233 = sbr.rel (%p231) target = $region44
        $region43: #{tpu_custom_call.1} parent=23 // pred_region
          %v234 = vld [vmem:[#allocation3] sm:$0x1]
          %v236 = vlaneseq
          %v237 = vshrl.u32 %v236, 7
          %v238 = vsub.s32 0, %v237
          %v239 = vrot.slane %v234, %v238
          %v241 = vsub.f32 %v196, %v239
          %v242 = vsel %vm202, %v241, 0.0
          %v243 = vmul.f32 %v242, %v242
          %v244 = vld [vmem:[#allocation2] sm:$0xff]
          %v245 = vadd.f32 %v243, 0.0
          %v246 = vadd.f32 %v244, %v245
          %vm247 = vcmask 261120
          %248 = vst.msk [vmem:[#allocation2] sm:$0xff] %vm247, %v246
        $region44: #{tpu_custom_call.1} parent=23 // pred_fallthru
          _
        %p249 = pnand %p230, %p190
        %p250 = pneg %p249
        // Predicated region
        $region45: #{tpu_custom_call.1} parent=23 // pred_check
          _
        $region46: #{tpu_custom_call.1} parent=23 // pred_check_branch
          %252 = sbr.rel (%p249) target = $region48
        $region47: #{tpu_custom_call.1} parent=23 // pred_region
          %v253 = vld [vmem:[#allocation2] sm:$0xff]
          %vm254 = vcmask 261120
          %v255 = vsel %vm254, %v253, 0.0
          %v256 = vrot.slane %v255, 4
          %v257 = vadd.f32 %v255, %v256
          %v258 = vrot.slane %v257, 2
          %v259 = vadd.f32 %v257, %v258
          %v260 = vrot.slane %v259, 1
          %v261 = vadd.f32 %v259, %v260
          %v262 = vrcp.pop 7.0
          %v263 = vmul.f32 %v261, %v262
          %v264 = vmax.f32 %v263, 0.0
          %v265 = vrsqrt.pop %v264
          %v266 = vmul.f32 %v264, %v265
          %vm267 = vcmp.eq.f32.partialorder %v264, inf
          %v268 = vsel %vm267, %v264, %v266
          %vm269 = vcmp.eq.f32.partialorder %v264, 0.0
          %v270 = vand.u32 %v264, 2147483648
          %v271 = vsel %vm269, %v270, %v268
          %v272 = vadd.f32 %v271, 1.0
          %v273 = vrcp.pop %v272
          %v274 = vmul.f32 1.0, %v273
          %v275 = vlog2.pop %v274
          %v276 = vmul.f32 %v275, 0.6931472
          %vm277 = vcmask 253952
          %278 = vst.msk [vmem:[#allocation7] sm:$0x1] %vm277, %v276
          %v279 = vld [vmem:[#allocation3] sm:$0x1]
          %280 = vst.msk [vmem:[#allocation8] sm:$0x1] %vm277, %v279
          %281 = vst.msk [vmem:[#allocation10] sm:$0x1] %vm277, %v274
        $region48: #{tpu_custom_call.1} parent=23 // pred_fallthru
          _
        // Predicated region
        $region49: #{tpu_custom_call.1} parent=23 // pred_check
          %p282 = pneg %p83
        $region50: #{tpu_custom_call.1} parent=23 // pred_check_branch
          %284 = sbr.rel (%p282) target = $region52
        $region51: #{tpu_custom_call.1} parent=23 // pred_region
          %s286 = ssub.s32 16, 16
          %287 = vsyncadd [#allocation6], %s286
          %s288 = smul.addr %s23, 16
          %s289 = scalar_lea.hbm %s1, %s288
          %s291 = sshll.u32 [#allocation7], 4
          %s292 = int_to_ptr.vmem [resolvable:$true] %s291
          %294 = dma.vmem_to_hbm [thread:$0]  %s292, 16, %s289, [#allocation6]
        $region52: #{tpu_custom_call.1} parent=23 // pred_fallthru
          _
        // Predicated region
        $region53: #{tpu_custom_call.1} parent=23 // pred_check
          %p295 = pneg %p109
        $region54: #{tpu_custom_call.1} parent=23 // pred_check_branch
          %297 = sbr.rel (%p295) target = $region56
        $region55: #{tpu_custom_call.1} parent=23 // pred_region
          %s299 = ssub.s32 16, 16
          %300 = vsyncadd [#allocation9], %s299
          %s301 = smul.addr %s23, 16
          %s302 = scalar_lea.hbm %s2, %s301
          %s304 = sshll.u32 [#allocation8], 4
          %s305 = int_to_ptr.vmem [resolvable:$true] %s304
          %307 = dma.vmem_to_hbm [thread:$0]  %s305, 16, %s302, [#allocation9]
        $region56: #{tpu_custom_call.1} parent=23 // pred_fallthru
          _
        // Predicated region
        $region57: #{tpu_custom_call.1} parent=23 // pred_check
          %p308 = pneg %p135
        $region58: #{tpu_custom_call.1} parent=23 // pred_check_branch
          %310 = sbr.rel (%p308) target = $region60
        $region59: #{tpu_custom_call.1} parent=23 // pred_region
          %s312 = ssub.s32 16, 16
          %313 = vsyncadd [#allocation9], %s312
          %s314 = smul.addr %s23, 16
          %s315 = scalar_lea.hbm %s3, %s314
          %s317 = sshll.u32 [#allocation10], 4
          %s318 = int_to_ptr.vmem [resolvable:$true] %s317
          %320 = dma.vmem_to_hbm [thread:$0]  %s318, 16, %s315, [#allocation9]
        $region60: #{tpu_custom_call.1} parent=23 // pred_fallthru
          _
        // Predicated region
        $region61: #{tpu_custom_call.1} parent=23 // pred_check
          %p321 = pneg %p83
        $region62: #{tpu_custom_call.1} parent=23 // pred_check_branch
          %323 = sbr.rel (%p321) target = $region64
        $region63: #{tpu_custom_call.1} parent=23 // pred_region
          %324 = dma.done [#allocation6], 16
        $region64: #{tpu_custom_call.1} parent=23 // pred_fallthru
          _
        // Predicated region
        $region65: #{tpu_custom_call.1} parent=23 // pred_check
          %p325 = pneg %p109
        $region66: #{tpu_custom_call.1} parent=23 // pred_check_branch
          %327 = sbr.rel (%p325) target = $region68
        $region67: #{tpu_custom_call.1} parent=23 // pred_region
          %328 = dma.done [#allocation9], 16
        $region68: #{tpu_custom_call.1} parent=23 // pred_fallthru
          _
        // Predicated region
        $region69: #{tpu_custom_call.1} parent=23 // pred_check
          %p329 = pneg %p135
        $region70: #{tpu_custom_call.1} parent=23 // pred_check_branch
          %331 = sbr.rel (%p329) target = $region72
        $region71: #{tpu_custom_call.1} parent=23 // pred_region
          %332 = dma.done [#allocation9], 16
        $region72: #{tpu_custom_call.1} parent=23 // pred_fallthru
          _
      $region24: #{tpu_custom_call.1} parent=5 // pred_fallthru
        _
      %p333 = scmp.le.s32.totalorder 2, %s13
      // Predicated region
      $region73: #{tpu_custom_call.1} parent=5 // pred_check
        %p334 = pneg %p333
      $region74: #{tpu_custom_call.1} parent=5 // pred_check_branch
        %336 = sbr.rel (%p334) target = $region76
      $region75: #{tpu_custom_call.1} parent=5 // pred_region
        %s337 = ssub.s32 %s13, 2
      $region76: #{tpu_custom_call.1} parent=5 // pred_fallthru
        _
    $region6: #{tpu_custom_call.1} parent=1 // loop_footer
      %s17 = sadd.s32 1, %s13
    $region7: #{tpu_custom_call.1} parent=1 // loop_footer_branch
      %12 = sbr.rel target = $region3
    $region8: #{tpu_custom_call.1} parent=1 // loop_exit
      _
    %338 = vsyncpa [#allocation5], 1
    %s339 = scalar_lea.sflag [#allocation5], 1
    %340 = vsyncpa %s339, 1
    %341 = vsyncpa [#allocation6], 1
    %s342 = scalar_lea.sflag [#allocation6], 1
    %343 = vsyncpa %s342, 1
    %344 = vsyncpa [#allocation9], 1

</llo_original>
